<compile_context>
chip_gen: v7x
topology: tpu7x:2x2x1
jax: 0.10.0
libtpu: 0.0.40
codegen_flags: <defaults>
</compile_context>

<pallas_src>
import jax
import jax.numpy as jnp
from jax.experimental import pallas as pl
from jax.experimental.pallas import tpu as pltpu

EPS = 1e-6


def _round_up(a: int, b: int) -> int:
    return ((a + b - 1) // b) * b


def _cdiv(a: int, b: int) -> int:
    return (a + b - 1) // b


def _tpu_vmem_capacity_bytes() -> int:
    # Trace-time hardware query; fall back to the smallest per-core VMEM of
    # the supported generations (v7x: 64 MiB) if the query is unavailable.
    try:
        return int(pltpu.get_tpu_info().vmem_capacity_bytes)
    except Exception:
        return 64 << 20


# ---------------------------------------------------------------------------
# Kernels
# ---------------------------------------------------------------------------
def _norm_lmhead_kernel(x_ref, g_ref, w_ref, o_ref, xn_ref):
    # x_ref:  (tm, H)  activations
    # g_ref:  (1, H)   f32 RMSNorm gamma
    # w_ref:  (H, tv)  lm_head weight slice
    # o_ref:  (tm, tv) f32 logits tile
    # xn_ref: (tm, H)  VMEM scratch holding the normalized activations,
    #                  computed once per token tile (vocab index j == 0) and
    #                  reused for every vocab tile.  Requires the vocab grid
    #                  axis to be "arbitrary" so a core never starts a token
    #                  tile at j != 0.
    @pl.when(pl.program_id(1) == 0)
    def _():
        x = x_ref[...].astype(jnp.float32)
        var = jnp.mean(x * x, axis=-1, keepdims=True)
        xn = x * jax.lax.rsqrt(var + EPS) * g_ref[...]
        xn_ref[...] = xn.astype(xn_ref.dtype)

    o_ref[...] = jnp.dot(xn_ref[...], w_ref[...],
                         preferred_element_type=jnp.float32)


def _rmsnorm_kernel(x_ref, g_ref, o_ref):
    x = x_ref[...].astype(jnp.float32)
    var = jnp.mean(x * x, axis=-1, keepdims=True)
    o_ref[...] = (x * jax.lax.rsqrt(var + EPS) * g_ref[...]).astype(o_ref.dtype)


def _gemm_kernel(xn_ref, w_ref, o_ref):
    o_ref[...] = jnp.dot(xn_ref[...], w_ref[...],
                         preferred_element_type=jnp.float32)


# ---------------------------------------------------------------------------
# Tile selection
# ---------------------------------------------------------------------------
def _select_tiles(rows, H, V, x_bytes, w_bytes, xn_bytes, vmem_cap,
                  tile_m_target, tile_v_target):
    budget = vmem_cap - (8 << 20)   # headroom for compiler-internal scratch

    # Vocab tile: large multiple of 128 (lane-dense W DMAs / output stores);
    # W is padded up to a multiple of tv and the padded logits sliced off.
    tv = min(tile_v_target, _round_up(V, 128))

    def balanced_tm(target):
        # Balance token tiles so non-divisible row counts don't force an
        # almost-empty last tile and an extra full pass over W.
        n = _cdiv(rows, target)
        return _round_up(_cdiv(rows, n), 8)

    def needed(tm, tv_):
        return (2 * tm * H * x_bytes       # double-buffered x tiles
                + 2 * H * tv_ * w_bytes    # double-buffered W tiles
                + 2 * tm * tv_ * 4         # double-buffered f32 logits tiles
                + tm * H * xn_bytes        # normalized-activation scratch
                + 2 * 8 * H * 4)           # gamma (sublane-padded, dbl-buf)

    target = tile_m_target
    tm = balanced_tm(target)
    while needed(tm, tv) > budget and target > 8:
        target //= 2
        tm = balanced_tm(target)
    while needed(tm, tv) > budget and tv > 128:
        tv = max(128, tv // 2)
    if needed(tm, tv) > budget:
        raise ValueError("norm_lm_head tiles do not fit in VMEM at minimum sizes")

    v_pad = _round_up(V, tv)
    return tm, target, tv, v_pad, needed(tm, tv), budget


# ---------------------------------------------------------------------------
# Wrapper
# ---------------------------------------------------------------------------
def norm_lm_head(hidden_states, gamma, w, *, mode="auto",
                 tile_m=None, tile_v=1024):
    """Fused RMSNorm + lm_head projection. Returns float32 logits [B, S, V].

    mode:
      "fused"    - single pass; normalized activations cached in VMEM scratch,
                   W streamed once per token tile (compute-bound when tm is
                   large enough for the generation).
      "two_pass" - RMSNorm to HBM, then a GEMM with the vocab axis outer so W
                   is streamed from HBM exactly once (regime where VMEM
                   forbids a compute-bound token tile, e.g. very large H).
      "auto"     - fused unless the compute-bound token tile does not fit
                   VMEM and W would be re-streamed across many token tiles.
    """
    B, S, H = hidden_states.shape
    Hw, V = w.shape
    assert Hw == H

    rows = B * S
    x2d = hidden_states.reshape(rows, H)
    g2d = gamma.reshape(1, H).astype(jnp.float32)

    x_bytes = jnp.dtype(x2d.dtype).itemsize
    w_bytes = jnp.dtype(w.dtype).itemsize
    # Normalized activations keep the activation float dtype (bf16 default);
    # never w.dtype (int8/fp8 weights would silently quantize activations).
    xn_dtype = x2d.dtype if x2d.dtype in (jnp.float32, jnp.bfloat16) else jnp.bfloat16
    xn_bytes = jnp.dtype(xn_dtype).itemsize

    vmem_cap = _tpu_vmem_capacity_bytes()
    # Compute-bound token-tile target per generation: ~1024 on 128-MiB-VMEM
    # parts (v5e/v6e), ~512 on 64-MiB parts (v7x).
    tm_target_init = tile_m if tile_m is not None else (
        1024 if vmem_cap >= (100 << 20) else 512)

    tm, tm_target, tv, v_pad, vmem_needed, budget = _select_tiles(
        rows, H, V, x_bytes, w_bytes, xn_bytes, vmem_cap,
        tm_target_init, tile_v)

    num_m = _cdiv(rows, tm)
    rows_p = num_m * tm
    num_v = v_pad // tv

    if rows_p != rows:
        x2d = jnp.pad(x2d, ((0, rows_p - rows), (0, 0)))
    w_p = w if v_pad == V else jnp.pad(w, ((0, 0), (0, v_pad - V)))

    vmem_limit = int(min(budget, max(vmem_needed + (4 << 20), 16 << 20)))

    if mode == "auto":
        use_two_pass = (tm_target < tm_target_init) and (num_m > 1)
    else:
        use_two_pass = (mode == "two_pass")

    if not use_two_pass:
        cost = pl.CostEstimate(
            flops=2 * rows_p * H * v_pad,
            transcendentals=rows_p,
            bytes_accessed=int(num_m * H * v_pad * w_bytes   # W re-streamed
                               + rows_p * H * x_bytes        # x read once
                               + rows_p * v_pad * 4),        # f32 logits out
        )
        logits = pl.pallas_call(
            _norm_lmhead_kernel,
            out_shape=jax.ShapeDtypeStruct((rows_p, v_pad), jnp.float32),
            grid_spec=pltpu.PrefetchScalarGridSpec(
                num_scalar_prefetch=0,
                grid=(num_m, num_v),
                in_specs=[
                    pl.BlockSpec((tm, H), lambda i, j: (i, 0)),
                    pl.BlockSpec((1, H), lambda i, j: (0, 0)),
                    pl.BlockSpec((H, tv), lambda i, j: (0, j)),
                ],
                out_specs=pl.BlockSpec((tm, tv), lambda i, j: (i, j)),
                scratch_shapes=[pltpu.VMEM((tm, H), xn_dtype)],
            ),
            compiler_params=pltpu.CompilerParams(
                # Vocab axis must be "arbitrary": xn scratch is filled at j==0.
                # TODO(synk): on v7x (2 TCs), if still W-bound, split the vocab
                # axis across cores instead of tokens to halve per-chip W HBM
                # traffic.
                dimension_semantics=("parallel", "arbitrary"),
                vmem_limit_bytes=vmem_limit,
            ),
            cost_estimate=cost,
        )(x2d, g2d, w_p)
    else:
        # Pass 1: RMSNorm to HBM (cheap memory-bound pass over rows*H).
        norm_cost = pl.CostEstimate(
            flops=3 * rows_p * H,
            transcendentals=rows_p,
            bytes_accessed=int(rows_p * H * (x_bytes + xn_bytes)),
        )
        xn = pl.pallas_call(
            _rmsnorm_kernel,
            out_shape=jax.ShapeDtypeStruct((rows_p, H), xn_dtype),
            grid_spec=pltpu.PrefetchScalarGridSpec(
                num_scalar_prefetch=0,
                grid=(num_m,),
                in_specs=[pl.BlockSpec((tm, H), lambda i: (i, 0)),
                          pl.BlockSpec((1, H), lambda i: (0, 0))],
                out_specs=pl.BlockSpec((tm, H), lambda i: (i, 0)),
            ),
            compiler_params=pltpu.CompilerParams(
                dimension_semantics=("parallel",),
                vmem_limit_bytes=vmem_limit,
            ),
            cost_estimate=norm_cost,
        )(x2d, g2d)

        # Pass 2: pure GEMM.  Vocab axis OUTER, token axis inner; W's block
        # index is constant over the inner axis so each W slice is DMA'd from
        # HBM exactly once (total W traffic = H*V bytes, independent of rows).
        gemm_cost = pl.CostEstimate(
            flops=2 * rows_p * H * v_pad,
            transcendentals=0,
            bytes_accessed=int(H * v_pad * w_bytes
                               + num_v * rows_p * H * xn_bytes
                               + rows_p * v_pad * 4),
        )
        logits = pl.pallas_call(
            _gemm_kernel,
            out_shape=jax.ShapeDtypeStruct((rows_p, v_pad), jnp.float32),
            grid_spec=pltpu.PrefetchScalarGridSpec(
                num_scalar_prefetch=0,
                grid=(num_v, num_m),
                in_specs=[pl.BlockSpec((tm, H), lambda j, i: (i, 0)),
                          pl.BlockSpec((H, tv), lambda j, i: (0, j))],
                out_specs=pl.BlockSpec((tm, tv), lambda j, i: (i, j)),
            ),
            compiler_params=pltpu.CompilerParams(
                # Vocab (outer) axis "parallel": on 2-TC parts each core gets
                # a disjoint half of W -> halves per-chip W HBM traffic.
                dimension_semantics=("parallel", "arbitrary"),
                vmem_limit_bytes=vmem_limit,
            ),
            cost_estimate=gemm_cost,
        )(xn, w_p)

    if rows_p != rows or v_pad != V:
        logits = logits[:rows, :V]
    return logits.reshape(B, S, V)


def language_model_final_wrapper(inputs, gamma, w):
    """Final pipeline-stage forward (attention_mask=None path)."""
    hidden_states, attention_mask, labels = inputs
    if attention_mask is not None:
        # TODO(synk): boolean masked-select produces a data-dependent output
        # shape; no static-shape JAX/Pallas equivalent. Only the
        # attention_mask=None branch is implemented.
        raise NotImplementedError("masked-select path has dynamic shape")
    # Shift BEFORE the projection so we never compute logits for the final
    # position that the shift immediately discards.
    shift_hidden = hidden_states[:, :-1, :]
    shift_logits = norm_lm_head(shift_hidden, gamma, w)   # float32 logits
    shift_labels = labels[..., 1:]
    # TODO(synk): fusing the shifted-label cross-entropy here would remove the
    # rows*V f32 logits writeback entirely if the consumer allows it.
    return shift_logits, shift_labels


if __name__ == "__main__":
    B, S, H, V = 2, 8, 32, 256
    key = jax.random.PRNGKey(0)
    k_x, k_g, k_w, k_l = jax.random.split(key, 4)

    hidden_states = jax.random.normal(k_x, (B, S, H), dtype=jnp.bfloat16)
    gamma = jnp.ones((H,), dtype=jnp.float32) + \
        0.01 * jax.random.normal(k_g, (H,), dtype=jnp.float32)
    w = (jax.random.normal(k_w, (H, V), dtype=jnp.float32)
         * (1.0 / jnp.sqrt(H))).astype(jnp.bfloat16)
    labels = jax.random.randint(k_l, (B, S), 0, V, dtype=jnp.int32)

    shift_logits, shift_labels = language_model_final_wrapper(
        (hidden_states, None, labels), gamma, w)
    jax.block_until_ready(shift_logits)
    jax.block_until_ready(shift_labels)

    assert shift_logits.shape == (B, S - 1, V)
    assert shift_logits.dtype == jnp.float32
    assert shift_labels.shape == (B, S - 1)

    # Pure-JAX reference (same dtype path: normalize in f32, cast to bf16
    # before the matmul, f32 accumulation on the MXU).
    x32 = hidden_states[:, :-1, :].astype(jnp.float32)
    ref = (x32 * jax.lax.rsqrt(jnp.mean(x32 * x32, -1, keepdims=True) + EPS)
           * gamma).astype(jnp.bfloat16)
    ref_logits = jnp.einsum("bsh,hv->bsv", ref.astype(jnp.float32),
                            w.astype(jnp.float32))
    assert jnp.allclose(shift_logits, ref_logits, atol=1e-1, rtol=1e-2)

    # Also exercise the W-read-once two-pass schedule (the path auto-selected
    # when VMEM forbids a compute-bound token tile at real sizes).
    two_pass = norm_lm_head(hidden_states[:, :-1, :], gamma, w, mode="two_pass")
    jax.block_until_ready(two_pass)
    assert jnp.allclose(two_pass, ref_logits, atol=1e-1, rtol=1e-2)

    # And a non-multiple-of-128 vocab to exercise the W-padding path
    # (previously a hard assert failure).
    V2 = 200
    w2 = w[:, :V2]
    odd = norm_lm_head(hidden_states[:, :-1, :], gamma, w2)
    jax.block_until_ready(odd)
    assert odd.shape == (B, S - 1, V2)
    assert jnp.allclose(odd, ref_logits[..., :V2], atol=1e-1, rtol=1e-2)

    print("KERNEL_OK")
</pallas_src>

<mosaic_0001>
module attributes {stable_mosaic.version = 11 : i64} {
  func.func @_norm_lmhead_kernel(%arg0: i32, %arg1: i32, %arg2: memref<16x32xbf16, #tpu.memory_space<vmem>>, %arg3: memref<1x32xf32, #tpu.memory_space<vmem>>, %arg4: memref<32x256xbf16, #tpu.memory_space<vmem>>, %arg5: memref<16x256xf32, #tpu.memory_space<vmem>>, %arg6: memref<16x32xbf16, #tpu.memory_space<vmem>>) attributes {dimension_semantics = [#tpu.dimension_semantics<parallel>, #tpu.dimension_semantics<arbitrary>], iteration_bounds = array<i64: 1, 1>, scalar_prefetch = 0 : i64, scratch_operands = 1 : i64, tpu.core_type = #tpu.core_type<tc>, window_params = [{transform_indices = @transform_0, window_bounds = array<i64: 16, 32>}, {pipeline_mode = #tpu.pipeline_mode<synchronous>, transform_indices = @transform_1, window_bounds = array<i64: 1, 32>}, {transform_indices = @transform_2, window_bounds = array<i64: 32, 256>}, {transform_indices = @transform_3, window_bounds = array<i64: 16, 256>}]} {
    %c0_i32 = arith.constant 0 : i32
    %0 = arith.cmpi eq, %arg1, %c0_i32 : i32
    %1 = arith.extui %0 : i1 to i32
    %c0_i32_0 = arith.constant 0 : i32
    %2 = arith.cmpi ne, %1, %c0_i32_0 : i32
    scf.if %2 {
      %c0_6 = arith.constant 0 : index
      %c0_7 = arith.constant 0 : index
      %7 = vector.load %arg2[%c0_6, %c0_7] : memref<16x32xbf16, #tpu.memory_space<vmem>>, vector<16x32xbf16>
      %8 = arith.extf %7 : vector<16x32xbf16> to vector<16x32xf32>
      %9 = arith.mulf %8, %8 : vector<16x32xf32>
      %cst_8 = arith.constant dense<0.000000e+00> : vector<16xf32>
      %10 = vector.multi_reduction <add>, %9, %cst_8 [1] : vector<16x32xf32> to vector<16xf32>
      %11 = vector.shape_cast %10 : vector<16xf32> to vector<16x1xf32>
      %cst_9 = arith.constant 3.200000e+01 : f32
      %12 = vector.broadcast %cst_9 : f32 to vector<16x1xf32>
      %13 = arith.divf %11, %12 : vector<16x1xf32>
      %cst_10 = arith.constant 9.99999997E-7 : f32
      %14 = vector.broadcast %cst_10 : f32 to vector<16x1xf32>
      %15 = arith.addf %13, %14 : vector<16x1xf32>
      %16 = math.rsqrt %15 : vector<16x1xf32>
      %17 = vector.broadcast %16 : vector<16x1xf32> to vector<16x32xf32>
      %18 = arith.mulf %8, %17 : vector<16x32xf32>
      %c0_11 = arith.constant 0 : index
      %c0_12 = arith.constant 0 : index
      %19 = vector.load %arg3[%c0_11, %c0_12] : memref<1x32xf32, #tpu.memory_space<vmem>>, vector<1x32xf32>
      %20 = vector.broadcast %19 : vector<1x32xf32> to vector<16x32xf32>
      %21 = arith.mulf %18, %20 : vector<16x32xf32>
      %22 = arith.truncf %21 : vector<16x32xf32> to vector<16x32xbf16>
      %c0_13 = arith.constant 0 : index
      %c0_14 = arith.constant 0 : index
      %23 = vector.load %arg6[%c0_13, %c0_14] : memref<16x32xbf16, #tpu.memory_space<vmem>>, vector<16x32xbf16>
      tpu.vector_store %arg6[%c0_13, %c0_14], %22 {strides = array<i32>} : memref<16x32xbf16, #tpu.memory_space<vmem>>, vector<16x32xbf16>,
    } else {
    }
    %c0 = arith.constant 0 : index
    %c0_1 = arith.constant 0 : index
    %3 = vector.load %arg6[%c0, %c0_1] : memref<16x32xbf16, #tpu.memory_space<vmem>>, vector<16x32xbf16>
    %c0_2 = arith.constant 0 : index
    %c0_3 = arith.constant 0 : index
    %4 = vector.load %arg4[%c0_2, %c0_3] : memref<32x256xbf16, #tpu.memory_space<vmem>>, vector<32x256xbf16>
    %cst = arith.constant dense<0.000000e+00> : vector<16x256xf32>
    %5 = tpu.matmul %3, %4, %cst {dimension_numbers = #tpu.dot_dimension_numbers<[1], [0], [0], [1], [0, 0, 1, 1], [], []>} : vector<16x32xbf16>, vector<32x256xbf16>, vector<16x256xf32> -> vector<16x256xf32>
    %c0_4 = arith.constant 0 : index
    %c0_5 = arith.constant 0 : index
    %6 = vector.load %arg5[%c0_4, %c0_5] : memref<16x256xf32, #tpu.memory_space<vmem>>, vector<16x256xf32>
    tpu.vector_store %arg5[%c0_4, %c0_5], %5 {strides = array<i32>} : memref<16x256xf32, #tpu.memory_space<vmem>>, vector<16x256xf32>,
    return
  }
  func.func @transform_0(%arg0: i32, %arg1: i32) -> (i32, i32) {
    %c0_i32 = arith.constant 0 : i32
    %c0_i32_0 = arith.constant 0 : i32
    return %arg0, %c0_i32 : i32, i32
  }
  func.func @transform_1(%arg0: i32, %arg1: i32) -> (i32, i32) {
    %c0_i32 = arith.constant 0 : i32
    %c0_i32_0 = arith.constant 0 : i32
    %c0_i32_1 = arith.constant 0 : i32
    return %c0_i32, %c0_i32_0 : i32, i32
  }
  func.func @transform_2(%arg0: i32, %arg1: i32) -> (i32, i32) {
    %c0_i32 = arith.constant 0 : i32
    %c0_i32_0 = arith.constant 0 : i32
    return %c0_i32, %arg1 : i32, i32
  }
  func.func @transform_3(%arg0: i32, %arg1: i32) -> (i32, i32) {
    %c0_i32 = arith.constant 0 : i32
    return %arg0, %arg1 : i32, i32
  }
}

</mosaic_0001>

<llo_original>
// kernel: tpu_custom_call.1
$region0: #{tpu_custom_call.1}
  #allocation0 [shape = 'u32[]', space=smem, size = 0x4, offset = 0x4, fixed_abs, tag = 'smem constant byte address 0x4 - core index']
  #allocation1 [shape = 'u32[144,128]{1,0:T(1,128)}', space=vmem, size = 0x12000, scoped, tag = 'internal scratch']
  #allocation2 [shape = 'bf16[16,32]{1,0:T(16,128)(2,1)}', space=vmem, size = 0x1000, scoped, tag = 'scratch operand']
  %s0 = inlined_call_operand.hbm [shape: bf16[16,32], index: 0, kind: input, shape index: {}]
  %s1 = inlined_call_operand.vmem [shape: f32[1,32], index: 1, kind: input, shape index: {}]
  %s2 = inlined_call_operand.hbm [shape: bf16[32,256], index: 2, kind: input, shape index: {}]
  %s3 = inlined_call_operand.hbm [shape: f32[16,256], index: 3, kind: output, shape index: {}]
  %s4 = sld [smem:[#allocation0]]
  $region34: #{tpu_custom_call.1} parent=0
    _
  %s6 = ssub.s32 1, %s4
  %s7 = scalar_select 0, %s6, %s4
  $region1: #{tpu_custom_call.1} parent=0
    #allocation3 [shape = 'u8[4096]{0}', space=vmem, size = 0x1000, scoped, tag = 'input window, operand 0, single buffered']
    #allocation4 [shape = 's32[1]{0}', space=sflag, size = 0x4, scoped, tag = 'scoped memory for tpu_custom_call.1']
    #allocation5 [shape = 's32[1]{0}', space=sflag, size = 0x4, scoped, tag = 'scoped memory for tpu_custom_call.1']
    #allocation6 [shape = 'u8[16384]{0}', space=vmem, size = 0x4000, scoped, tag = 'input window, operand 2, single buffered']
    #allocation7 [shape = 's32[1]{0}', space=sflag, size = 0x4, scoped, tag = 'scoped memory for tpu_custom_call.1']
    #allocation8 [shape = 'u8[16384]{0}', space=vmem, size = 0x4000, scoped, tag = 'output window, operand 0, single buffered']
    %8 = vsyncpa [#allocation4], 0
    %9 = vsyncpa [#allocation7], 0
    %10 = vsyncpa [#allocation5], 0
    // Predicated region
    $region2: #{tpu_custom_call.1} parent=1 // pred_check
      _
    $region3: #{tpu_custom_call.1} parent=1 // pred_check_branch
      %12 = sbr.rel (0) target = $region5
    $region4: #{tpu_custom_call.1} parent=1 // pred_region
      %s14 = ssub.s32 128, 128
      %15 = vsyncadd [#allocation4], %s14
      %s16 = sshll.u32 [#allocation3], 4
      %s17 = int_to_ptr.vmem [resolvable:$true] %s16
      %22 = dma.hbm_to_vmem [thread:$0]  %s0, 128, %s17, [#allocation4], 64, 64, 4
    $region5: #{tpu_custom_call.1} parent=1 // pred_fallthru
      _
    // Predicated region
    $region6: #{tpu_custom_call.1} parent=1 // pred_check
      _
    $region7: #{tpu_custom_call.1} parent=1 // pred_check_branch
      %24 = sbr.rel (0) target = $region9
    $region8: #{tpu_custom_call.1} parent=1 // pred_region
      _
    $region9: #{tpu_custom_call.1} parent=1 // pred_fallthru
      _
    // Predicated region
    $region10: #{tpu_custom_call.1} parent=1 // pred_check
      _
    $region11: #{tpu_custom_call.1} parent=1 // pred_check_branch
      %26 = sbr.rel (0) target = $region13
    $region12: #{tpu_custom_call.1} parent=1 // pred_region
      %s28 = ssub.s32 512, 512
      %29 = vsyncadd [#allocation7], %s28
      %s30 = sshll.u32 [#allocation6], 4
      %s31 = int_to_ptr.vmem [resolvable:$true] %s30
      %36 = dma.hbm_to_vmem [thread:$0]  %s2, 512, %s31, [#allocation7], 128, 128, 8
    $region13: #{tpu_custom_call.1} parent=1 // pred_fallthru
      _
    // Predicated region
    $region14: #{tpu_custom_call.1} parent=1 // pred_check
      _
    $region15: #{tpu_custom_call.1} parent=1 // pred_check_branch
      %38 = sbr.rel (0) target = $region17
    $region16: #{tpu_custom_call.1} parent=1 // pred_region
      %39 = dma.done [#allocation4], 128
    $region17: #{tpu_custom_call.1} parent=1 // pred_fallthru
      _
    // Predicated region
    $region18: #{tpu_custom_call.1} parent=1 // pred_check
      _
    $region19: #{tpu_custom_call.1} parent=1 // pred_check_branch
      %41 = sbr.rel (0) target = $region21
    $region20: #{tpu_custom_call.1} parent=1 // pred_region
      %42 = dma.done [#allocation7], 512
    $region21: #{tpu_custom_call.1} parent=1 // pred_fallthru
      _
    %p44 = scmp.eq.s32.totalorder 0, 0
    // Predicated region
    $region22: #{tpu_custom_call.1} parent=1 // pred_check
      %p45 = pneg %p44
    $region23: #{tpu_custom_call.1} parent=1 // pred_check_branch
      %47 = sbr.rel (%p45) target = $region25
    $region24: #{tpu_custom_call.1} parent=1 // pred_region
      %v48 = vld [vmem:[#allocation3] sm:$0xf]
      %v49 = vld [vmem:[#allocation3 + $0x4] sm:$0xf]
      %v50 = vunpack.c.l.bf16 %v48
      %v51 = vunpack.c.l.bf16 %v49
      %v52 = vmul.f32 %v50, %v50
      %v53 = vmul.f32 %v51, %v51
      %vm54 = vcmask 261120
      %v55 = vsel %vm54, %v52, 0.0
      %56 = vadd.xlane.f32.xlu0 %v55
      %v57 = vpop.xlane.xlu0 %56
      %v58 = vsel %vm54, %v53, 0.0
      %59 = vadd.xlane.f32.xlu0 %v58
      %v60 = vpop.xlane.xlu0 %59
      %v61 = vrcp.pop 32.0
      %v62 = vmul.f32 %v57, %v61
      %v63 = vmul.f32 %v60, %v61
      %v64 = vadd.f32 %v62, 1e-06
      %v65 = vadd.f32 %v63, 1e-06
      %v66 = vrsqrt.pop %v64
      %v67 = vrsqrt.pop %v65
      %v68 = vmul.f32 %v50, %v66
      %v69 = vmul.f32 %v51, %v67
      %v70 = vld [vmem:[%s1] sm:$0x1]
      %v72 = vlaneseq
      %v73 = vshrl.u32 %v72, 7
      %v74 = vsub.s32 0, %v73
      %v75 = vrot.slane %v70, %v74
      %v77 = vmul.f32 %v68, %v75
      %v78 = vmul.f32 %v69, %v75
      %v79 = vpack.c.bf16 %v78, %v77
      %80 = vst.msk [vmem:[#allocation2] sm:$0xff] %vm54, %v79
    $region25: #{tpu_custom_call.1} parent=1 // pred_fallthru
      _
    %v81 = vld [vmem:[#allocation2] sm:$0xff]
    %v82 = vld [vmem:[#allocation6] sm:$0xff]
    %v83 = vld [vmem:[#allocation6 + $0x8] sm:$0xff]
    %v84 = vld [vmem:[#allocation6 + $0x10] sm:$0xff]
    %v85 = vld [vmem:[#allocation6 + $0x18] sm:$0xff]
    %v90 = vunpack.c.l.b16 %v82
    %v91 = vunpack.c.h.b16 %v82
    %v92 = vunpack.c.l.b16 %v83
    %v93 = vunpack.c.h.b16 %v83
    %v94 = vunpack.c.l.b16 %v84
    %v95 = vunpack.c.h.b16 %v84
    %v96 = vunpack.c.l.b16 %v85
    %v97 = vunpack.c.h.b16 %v85
    %v98 = vpack.c.b16 %v92, %v90
    %v99 = vpack.c.b16 %v93, %v91
    %v100 = vpack.c.b16 %v96, %v94
    %v101 = vpack.c.b16 %v97, %v95
    %vm106 = vcmask 261120
    %v108 = vsel %vm106, %v81, 0
    %110 = vmatprep.subr.bf16.mxu0 %v99
    %111 = vmatpush1.bf16.msra.mxu0 %v98
    %112 = vmatprep.subr.bf16.mxu0 %v101
    %113 = vmatpush1.bf16.msra.mxu0 %v100
    %114 = vmatprep.subr.bf16.mxu0 0
    %115 = vmatpush1.bf16.msra.mxu0 0
    %116 = vmatprep.subr.bf16.mxu0 0
    %117 = vmatpush1.bf16.msra.mxu0 0
    %118 = vmatprep.subr.bf16.mxu0 0
    %119 = vmatpush1.bf16.msra.mxu0 0
    %120 = vmatprep.subr.bf16.mxu0 0
    %121 = vmatpush1.bf16.msra.mxu0 0
    %122 = vmatprep.subr.bf16.mxu0 0
    %123 = vmatpush1.bf16.msra.mxu0 0
    %124 = vmatprep.subr.bf16.mxu0 0
    %125 = vmatpush1.bf16.msra.mxu0 0
    %126 = vmatprep.subr.bf16.mxu0 0
    %127 = vmatpush1.bf16.msra.mxu0 0
    %128 = vmatprep.subr.bf16.mxu0 0
    %129 = vmatpush1.bf16.msra.mxu0 0
    %130 = vmatprep.subr.bf16.mxu0 0
    %131 = vmatpush1.bf16.msra.mxu0 0
    %132 = vmatprep.subr.bf16.mxu0 0
    %133 = vmatpush1.bf16.msra.mxu0 0
    %134 = vmatprep.subr.bf16.mxu0 0
    %135 = vmatpush1.bf16.msra.mxu0 0
    %136 = vmatprep.subr.bf16.mxu0 0
    %137 = vmatpush1.bf16.msra.mxu0 0
    %138 = vmatprep.subr.bf16.mxu0 0
    %139 = vmatpush1.bf16.msra.mxu0 0
    %140 = vmatprep.subr.bf16.mxu0 0
    %141 = vmatpush1.bf16.msra.mxu0 0
    %142 = vmatprep.mubr.bf16.mxu0 0
    %143 = vmatmul.mubr.bf16.gmra.mrb[0].mxu0 %v108
    %v144 = vpop.f32.mrb[0].mxu0
    %v145 = vadd.f32 0.0, %v144
    %v146 = vpop.f32.mrb[0].mxu0
    %v147 = vadd.f32 0.0, %v146
    %v148 = vpop.f32.mrb[0].mxu0
    %v149 = vadd.f32 0.0, %v148
    %v150 = vpop.f32.mrb[0].mxu0
    %v151 = vadd.f32 0.0, %v150
    %152 = vdwg.mxu0
    %153 = vst [vmem:[#allocation8] sm:$0xff] %v145
    %154 = vst [vmem:[#allocation8 + $0x8] sm:$0xff] %v147
    %155 = vst [vmem:[#allocation8 + $0x10] sm:$0xff] %v149
    %156 = vst [vmem:[#allocation8 + $0x18] sm:$0xff] %v151
    // Predicated region
    $region26: #{tpu_custom_call.1} parent=1 // pred_check
      _
    $region27: #{tpu_custom_call.1} parent=1 // pred_check_branch
      %158 = sbr.rel (0) target = $region29
    $region28: #{tpu_custom_call.1} parent=1 // pred_region
      %s160 = ssub.s32 512, 512
      %161 = vsyncadd [#allocation5], %s160
      %s162 = sshll.u32 [#allocation8], 4
      %s163 = int_to_ptr.vmem [resolvable:$true] %s162
      %168 = dma.vmem_to_hbm [thread:$0]  %s163, 512, %s3, [#allocation5], 256, 256, 16
    $region29: #{tpu_custom_call.1} parent=1 // pred_fallthru
      _
    // Predicated region
    $region30: #{tpu_custom_call.1} parent=1 // pred_check
      _
    $region31: #{tpu_custom_call.1} parent=1 // pred_check_branch
      %170 = sbr.rel (0) target = $region33
    $region32: #{tpu_custom_call.1} parent=1 // pred_region
      %171 = dma.done [#allocation5], 512
    $region33: #{tpu_custom_call.1} parent=1 // pred_fallthru
      _
    %172 = vsyncpa [#allocation4], 1
    %173 = vsyncpa [#allocation7], 1
    %174 = vsyncpa [#allocation5], 1

</llo_original>
